<compile_context>
chip_gen: v7x
topology: tpu7x:2x2x1
jax: 0.10.0
libtpu: 0.0.40
codegen_flags: <defaults>
</compile_context>

<pallas_src>
import jax
import jax.numpy as jnp
from jax.experimental import pallas as pl
from jax.experimental.pallas import tpu as pltpu

H1 = 256    # fc1 out
H2 = 128    # fc2 out
OUT = 10    # fc3 out
NUM_SPLITS = 2   # leading "parallel" grid axis -> uses both TensorCores on v7x


def _round_up(x, m):
    return ((x + m - 1) // m) * m


def _tile_config():
    """Generation-aware K tile (in bf16 elements) and scoped-VMEM limit."""
    try:
        vmem = pltpu.get_tpu_info().vmem_capacity_bytes
    except Exception:
        vmem = 64 << 20  # conservative fallback (v7x-sized)
    if vmem >= (96 << 20):        # v5e / v6e: 128 MiB physical VMEM
        return 16384, 80 << 20    # 16 MiB of double-buffered W1 blocks (bf16)
    else:                         # v7x: 64 MiB per TensorCore
        return 8192, 40 << 20     # 8 MiB of double-buffered W1 blocks (bf16)


def _fc1_partial_kernel(x_ref, w1_ref, part_ref, acc_ref):
    """Partial fc1 reduction: one parallel split accumulates its K range."""
    k = pl.program_id(1)

    @pl.when(k == 0)
    def _():
        acc_ref[...] = jnp.zeros_like(acc_ref)

    acc_ref[...] += jnp.dot(x_ref[...], w1_ref[...],
                            preferred_element_type=jnp.float32)

    @pl.when(k == pl.num_programs(1) - 1)
    def _():
        part_ref[0] = acc_ref[...]          # (1, H1) partial sum for this split


def _epilogue_kernel(part_ref, b1_ref, w2_ref, b2_ref, w3_ref, b3_ref, out_ref):
    """Combine partials + bias/ReLU + fc2 + fc3 + softmax (tiny, one shot)."""
    psum = jnp.sum(part_ref[...], axis=0)                        # (1, H1)
    h1 = jnp.maximum(psum + b1_ref[...], 0.0)
    h2 = jnp.dot(h1, w2_ref[...], preferred_element_type=jnp.float32) + b2_ref[...]
    h2 = jnp.maximum(h2, 0.0)
    logits = jnp.dot(h2, w3_ref[...], preferred_element_type=jnp.float32) + b3_ref[...]
    m = jnp.max(logits, axis=-1, keepdims=True)
    e = jnp.exp(logits - m)
    out_ref[...] = e * pl.reciprocal(jnp.sum(e, axis=-1, keepdims=True))


def net_forward(x, params, *, tk=None):
    """x: any-shaped array; fully flattened (like torch's x.view(-1))."""
    w1, b1, w2, b2, w3, b3 = params
    x_flat = x.reshape(1, -1)
    in_features = x_flat.shape[1]
    assert w1.shape[0] == in_features

    tk_default, vmem_limit = _tile_config()
    if tk is None:
        tk = tk_default

    per_split = pl.cdiv(in_features, NUM_SPLITS)
    tk = min(tk, _round_up(per_split, 512))        # shrink tile for tiny inputs
    nk = pl.cdiv(per_split, tk)                    # K steps per parallel split
    padded = NUM_SPLITS * nk * tk
    pad = padded - in_features

    # Stream x and W1 in bf16 (HBM-bandwidth bound); accumulate f32 on the MXU.
    x_bf = x_flat.astype(jnp.bfloat16)
    w1_bf = w1.astype(jnp.bfloat16)
    if pad:
        # Zero-pad the contraction dim so any tk works (1_440_000 included).
        # TODO(synk): at the real 1.44M-feature size, pre-pad W1 once at init
        # time instead of per call.
        x_bf = jnp.pad(x_bf, ((0, 0), (0, pad)))
        w1_bf = jnp.pad(w1_bf, ((0, pad), (0, 0)))

    partials = pl.pallas_call(
        _fc1_partial_kernel,
        out_shape=jax.ShapeDtypeStruct((NUM_SPLITS, 1, H1), jnp.float32),
        grid_spec=pltpu.PrefetchScalarGridSpec(
            num_scalar_prefetch=0,
            grid=(NUM_SPLITS, nk),
            in_specs=[
                pl.BlockSpec((1, tk),  lambda p, k: (0, p * nk + k)),   # x chunk
                pl.BlockSpec((tk, H1), lambda p, k: (p * nk + k, 0)),   # W1 chunk
            ],
            out_specs=pl.BlockSpec((1, 1, H1), lambda p, k: (p, 0, 0)),
            scratch_shapes=[pltpu.VMEM((1, H1), jnp.float32)],
        ),
        compiler_params=pltpu.CompilerParams(
            dimension_semantics=("parallel", "arbitrary"),
            vmem_limit_bytes=vmem_limit,
        ),
    )(x_bf, w1_bf)

    # Tiny fused epilogue: combine the two partial sums, fc2/fc3, softmax.
    probs = pl.pallas_call(
        _epilogue_kernel,
        out_shape=jax.ShapeDtypeStruct((1, OUT), jnp.float32),
    )(partials, b1, w2, b2, w3, b3)

    return probs.reshape(OUT)   # 1-D (10,), matching torch forward on a flat vector


def init_params(key, in_features):
    """nn.Linear-style U(-1/sqrt(fan_in), 1/sqrt(fan_in)) init.
    Weights stored as (in, out) = torch_weight.T.  W1 is kept in bf16 since it
    is the only huge streaming operand; everything else stays f32."""
    ks = jax.random.split(key, 6)

    def lin(kw, kb, fan_in, fan_out):
        bound = 1.0 / jnp.sqrt(jnp.float32(fan_in))
        w = jax.random.uniform(kw, (fan_in, fan_out), jnp.float32, -bound, bound)
        b = jax.random.uniform(kb, (1, fan_out), jnp.float32, -bound, bound)
        return w, b

    w1, b1 = lin(ks[0], ks[1], in_features, H1)
    w2, b2 = lin(ks[2], ks[3], H1, H2)
    w3, b3 = lin(ks[4], ks[5], H2, OUT)
    return (w1.astype(jnp.bfloat16), b1, w2, b2, w3, b3)


if __name__ == "__main__":
    key = jax.random.PRNGKey(0)
    kx, kp = jax.random.split(key)

    # Small NCHW-like input; forward flattens it entirely -> 2*4*16*16 = 2048 feats.
    x = jax.random.normal(kx, (2, 4, 16, 16), dtype=jnp.float32)
    in_features = x.size

    params = init_params(kp, in_features)

    y = net_forward(x, params)
    y = jax.block_until_ready(y)

    # Pure-JAX reference of the same math (bf16 streaming inputs, f32 accumulate).
    w1, b1, w2, b2, w3, b3 = params
    xf = x.reshape(1, -1)
    h1 = jnp.dot(xf.astype(jnp.bfloat16), w1, preferred_element_type=jnp.float32) + b1
    h1 = jnp.maximum(h1, 0.0)
    h2 = jnp.maximum(h1 @ w2 + b2, 0.0)
    logits = h2 @ w3 + b3
    ref = jax.nn.softmax(logits, axis=-1).reshape(-1)

    assert y.shape == (OUT,)
    assert jnp.allclose(y, ref, atol=1e-4, rtol=1e-4)
    assert jnp.allclose(jnp.sum(y), 1.0, atol=1e-5)

    print("KERNEL_OK")
</pallas_src>

<mosaic_0001>
module attributes {stable_mosaic.version = 11 : i64} {
  func.func @_fc1_partial_kernel(%arg0: i32, %arg1: i32, %arg2: memref<1x1024xbf16, #tpu.memory_space<vmem>>, %arg3: memref<1024x256xbf16, #tpu.memory_space<vmem>>, %arg4: memref<1x1x256xf32, #tpu.memory_space<vmem>>, %arg5: memref<1x256xf32, #tpu.memory_space<vmem>>) attributes {dimension_semantics = [#tpu.dimension_semantics<parallel>, #tpu.dimension_semantics<arbitrary>], iteration_bounds = array<i64: 2, 1>, scalar_prefetch = 0 : i64, scratch_operands = 1 : i64, tpu.core_type = #tpu.core_type<tc>, window_params = [{transform_indices = @transform_0, window_bounds = array<i64: 1, 1024>}, {transform_indices = @transform_1, window_bounds = array<i64: 1024, 256>}, {transform_indices = @transform_2, window_bounds = array<i64: 1, 1, 256>}]} {
    %c0_i32 = arith.constant 0 : i32
    %0 = arith.cmpi eq, %arg1, %c0_i32 : i32
    %1 = arith.extui %0 : i1 to i32
    %c0_i32_0 = arith.constant 0 : i32
    %2 = arith.cmpi ne, %1, %c0_i32_0 : i32
    scf.if %2 {
      %cst_10 = arith.constant 0.000000e+00 : f32
      %12 = vector.broadcast %cst_10 : f32 to vector<1x256xf32>
      %c0_11 = arith.constant 0 : index
      %c0_12 = arith.constant 0 : index
      %13 = vector.load %arg5[%c0_11, %c0_12] : memref<1x256xf32, #tpu.memory_space<vmem>>, vector<1x256xf32>
      tpu.vector_store %arg5[%c0_11, %c0_12], %12 {strides = array<i32>} : memref<1x256xf32, #tpu.memory_space<vmem>>, vector<1x256xf32>,
    } else {
    }
    %c0 = arith.constant 0 : index
    %c0_1 = arith.constant 0 : index
    %3 = vector.load %arg5[%c0, %c0_1] : memref<1x256xf32, #tpu.memory_space<vmem>>, vector<1x256xf32>
    %c0_2 = arith.constant 0 : index
    %c0_3 = arith.constant 0 : index
    %4 = vector.load %arg2[%c0_2, %c0_3] : memref<1x1024xbf16, #tpu.memory_space<vmem>>, vector<1x1024xbf16>
    %c0_4 = arith.constant 0 : index
    %c0_5 = arith.constant 0 : index
    %5 = vector.load %arg3[%c0_4, %c0_5] : memref<1024x256xbf16, #tpu.memory_space<vmem>>, vector<1024x256xbf16>
    %cst = arith.constant dense<0.000000e+00> : vector<1x256xf32>
    %6 = tpu.matmul %4, %5, %cst {dimension_numbers = #tpu.dot_dimension_numbers<[1], [0], [0], [1], [0, 0, 1, 1], [], []>} : vector<1x1024xbf16>, vector<1024x256xbf16>, vector<1x256xf32> -> vector<1x256xf32>
    %7 = arith.addf %3, %6 : vector<1x256xf32>
    %c0_6 = arith.constant 0 : index
    %c0_7 = arith.constant 0 : index
    %8 = vector.load %arg5[%c0_6, %c0_7] : memref<1x256xf32, #tpu.memory_space<vmem>>, vector<1x256xf32>
    tpu.vector_store %arg5[%c0_6, %c0_7], %7 {strides = array<i32>} : memref<1x256xf32, #tpu.memory_space<vmem>>, vector<1x256xf32>,
    %c0_i32_8 = arith.constant 0 : i32
    %9 = arith.cmpi eq, %arg1, %c0_i32_8 : i32
    %10 = arith.extui %9 : i1 to i32
    %c0_i32_9 = arith.constant 0 : i32
    %11 = arith.cmpi ne, %10, %c0_i32_9 : i32
    scf.if %11 {
      %c0_10 = arith.constant 0 : index
      %c0_11 = arith.constant 0 : index
      %12 = vector.load %arg5[%c0_10, %c0_11] : memref<1x256xf32, #tpu.memory_space<vmem>>, vector<1x256xf32>
      %c0_12 = arith.constant 0 : index
      %c0_13 = arith.constant 0 : index
      %c0_14 = arith.constant 0 : index
      %13 = vector.load %arg4[%c0_12, %c0_13, %c0_14] : memref<1x1x256xf32, #tpu.memory_space<vmem>>, vector<1x1x256xf32>
      %14 = vector.shape_cast %13 : vector<1x1x256xf32> to vector<1x256xf32>
      %15 = vector.shape_cast %12 : vector<1x256xf32> to vector<1x1x256xf32>
      tpu.vector_store %arg4[%c0_12, %c0_13, %c0_14], %15 {strides = array<i32>} : memref<1x1x256xf32, #tpu.memory_space<vmem>>, vector<1x1x256xf32>,
    } else {
    }
    return
  }
  func.func @transform_0(%arg0: i32, %arg1: i32) -> (i32, i32) {
    %c1_i32 = arith.constant 1 : i32
    %0 = arith.muli %arg0, %c1_i32 : i32
    %1 = arith.addi %0, %arg1 : i32
    %c0_i32 = arith.constant 0 : i32
    %c0_i32_0 = arith.constant 0 : i32
    return %c0_i32, %1 : i32, i32
  }
  func.func @transform_1(%arg0: i32, %arg1: i32) -> (i32, i32) {
    %c1_i32 = arith.constant 1 : i32
    %0 = arith.muli %arg0, %c1_i32 : i32
    %1 = arith.addi %0, %arg1 : i32
    %c0_i32 = arith.constant 0 : i32
    %c0_i32_0 = arith.constant 0 : i32
    return %1, %c0_i32 : i32, i32
  }
  func.func @transform_2(%arg0: i32, %arg1: i32) -> (i32, i32, i32) {
    %c0_i32 = arith.constant 0 : i32
    %c0_i32_0 = arith.constant 0 : i32
    %c0_i32_1 = arith.constant 0 : i32
    return %arg0, %c0_i32, %c0_i32_0 : i32, i32, i32
  }
}

</mosaic_0001>

<llo_original>
// kernel: tpu_custom_call.1
$region0: #{tpu_custom_call.1}
  #allocation0 [shape = 'u32[]', space=smem, size = 0x4, offset = 0x4, fixed_abs, tag = 'smem constant byte address 0x4 - core index']
  #allocation1 [shape = 'u32[144,128]{1,0:T(1,128)}', space=vmem, size = 0x12000, scoped, tag = 'internal scratch']
  #allocation2 [shape = 'f32[1,256]{1,0:T(1,128)}', space=vmem, size = 0x400, scoped, tag = 'scratch operand']
  %s0 = inlined_call_operand.hbm [shape: bf16[1,2048], index: 0, kind: input, shape index: {}]
  %s1 = inlined_call_operand.hbm [shape: bf16[2048,256], index: 1, kind: input, shape index: {}]
  %s2 = inlined_call_operand.hbm [shape: f32[2,1,256], index: 2, kind: output, shape index: {}]
  %s3 = sld [smem:[#allocation0]]
  $region57: #{tpu_custom_call.1} parent=0
    _
  %s5 = ssub.s32 1, %s3
  %s6 = scalar_select 0, %s5, %s3
  $region1: #{tpu_custom_call.1} parent=0
    #allocation3 [shape = 'u8[8192]{0}', space=vmem, size = 0x2000, scoped, tag = 'input window, operand 0']
    #allocation4 [shape = 's32[2]{0}', space=sflag, size = 0x8, scoped, tag = 'scoped memory for tpu_custom_call.1']
    #allocation5 [shape = 's32[2]{0}', space=sflag, size = 0x8, scoped, tag = 'scoped memory for tpu_custom_call.1']
    #allocation6 [shape = 'u8[1048576]{0}', space=vmem, size = 0x100000, scoped, tag = 'input window, operand 1']
    #allocation7 [shape = 's32[2]{0}', space=sflag, size = 0x8, scoped, tag = 'scoped memory for tpu_custom_call.1']
    #allocation8 [shape = 'u8[2048]{0}', space=vmem, size = 0x800, scoped, tag = 'output window, operand 0']
    %7 = vsyncpa [#allocation4], 0
    %s8 = scalar_lea.sflag [#allocation4], 1
    %9 = vsyncpa %s8, 0
    %10 = vsyncpa [#allocation7], 0
    %s11 = scalar_lea.sflag [#allocation7], 1
    %12 = vsyncpa %s11, 0
    %13 = vsyncpa [#allocation5], 0
    %s14 = scalar_lea.sflag [#allocation5], 1
    %15 = vsyncpa %s14, 0
    loop: start=0, step=1, limit=4
    $region2: #{tpu_custom_call.1} parent=1 // loop_pre_header
      _
    $region3: #{tpu_custom_call.1} parent=1 // loop_header
      %s17 = sphi 0, %s21
      %p18 = scmp.ge.s32.totalorder %s17, 4
      %s24 = sphi 0, %s36
      %s25 = sphi 0, %s32
      %s26 = sphi 0, %s24
      %s27 = sphi 0, %s25
      %s28 = sphi 0, %s26
      %s29 = sphi 0, %s27
      %s41 = sphi 0, %s43
      %s44 = sphi 0, %s41
      %s45 = sphi 0, %s44
      %s61 = sphi 0, %s45
      %s69 = sphi 0, %s71
      %s72 = sphi 0, %s69
      %s73 = sphi 0, %s72
      %s89 = sphi 0, %s73
      %s95 = sphi 0, %s97
      %s98 = sphi 0, %s95
      %s99 = sphi 0, %s98
      %s115 = sphi 0, %s99
    $region4: #{tpu_custom_call.1} parent=1 // loop_header_branch
      %20 = sbr.rel (%p18) target = $region8
    $region5: #{tpu_custom_call.1} parent=1 // loop_body
      %s22 = ssub.s32 %s17, 1
      %s23 = ssub.s32 %s17, 2
      %s30 = sadd.s32 1, %s25
      %p31 = scmp.ge.s32.totalorder %s30, 1
      %s32 = scalar_select %p31, 0, %s30
      %s33 = sadd.s32 1, %s24
      %s34 = scalar_select %p31, %s33, %s24
      %p35 = scmp.ge.s32.totalorder %s34, 2
      %s36 = scalar_select %p35, 0, %s34
      %s37 = sadd.s32 %s24, %s25
      %s38 = sadd.s32 %s36, %s32
      %s39 = ssub.s32 %s37, %s38
      %p40 = scmp.eq.s32.totalorder %s39, 0
      %s42 = sadd.s32 %s41, 1
      %s43 = scalar_select %p40, %s41, %s42
      %p46 = pneg %p40
      %p47 = scmp.eq.s32.totalorder %s17, 1
      %p48 = por %p46, %p47
      %p49 = scmp.ne.s32.totalorder %s41, %s44
      %p50 = scmp.eq.s32.totalorder %s17, 0
      %p51 = por %p49, %p50
      %p52 = scmp.ne.s32.totalorder %s41, %s44
      %p53 = scmp.eq.s32.totalorder %s22, 1
      %p54 = por %p52, %p53
      %p55 = scmp.ne.s32.totalorder %s44, %s45
      %p56 = scmp.eq.s32.totalorder %s22, 0
      %p57 = por %p55, %p56
      %p58 = scmp.ne.s32.totalorder %s44, %s45
      %p59 = scmp.eq.s32.totalorder %s23, 1
      %p60 = por %p58, %p59
      %p62 = scmp.ne.s32.totalorder %s45, %s61
      %p63 = scmp.eq.s32.totalorder %s23, 0
      %p64 = por %p62, %p63
      %s65 = sadd.s32 %s24, %s25
      %s66 = sadd.s32 %s36, %s32
      %s67 = ssub.s32 %s65, %s66
      %p68 = scmp.eq.s32.totalorder %s67, 0
      %s70 = sadd.s32 %s69, 1
      %s71 = scalar_select %p68, %s69, %s70
      %p74 = pneg %p68
      %p75 = scmp.eq.s32.totalorder %s17, 1
      %p76 = por %p74, %p75
      %p77 = scmp.ne.s32.totalorder %s69, %s72
      %p78 = scmp.eq.s32.totalorder %s17, 0
      %p79 = por %p77, %p78
      %p80 = scmp.ne.s32.totalorder %s69, %s72
      %p81 = scmp.eq.s32.totalorder %s22, 1
      %p82 = por %p80, %p81
      %p83 = scmp.ne.s32.totalorder %s72, %s73
      %p84 = scmp.eq.s32.totalorder %s22, 0
      %p85 = por %p83, %p84
      %p86 = scmp.ne.s32.totalorder %s72, %s73
      %p87 = scmp.eq.s32.totalorder %s23, 1
      %p88 = por %p86, %p87
      %p90 = scmp.ne.s32.totalorder %s73, %s89
      %p91 = scmp.eq.s32.totalorder %s23, 0
      %p92 = por %p90, %p91
      %s93 = ssub.s32 %s24, %s36
      %p94 = scmp.eq.s32.totalorder %s93, 0
      %s96 = sadd.s32 %s95, 1
      %s97 = scalar_select %p94, %s95, %s96
      %p100 = pneg %p94
      %p101 = scmp.eq.s32.totalorder %s17, 1
      %p102 = por %p100, %p101
      %p103 = scmp.ne.s32.totalorder %s95, %s98
      %p104 = scmp.eq.s32.totalorder %s17, 0
      %p105 = por %p103, %p104
      %p106 = scmp.ne.s32.totalorder %s95, %s98
      %p107 = scmp.eq.s32.totalorder %s22, 1
      %p108 = por %p106, %p107
      %p109 = scmp.ne.s32.totalorder %s98, %s99
      %p110 = scmp.eq.s32.totalorder %s22, 0
      %p111 = por %p109, %p110
      %p112 = scmp.ne.s32.totalorder %s98, %s99
      %p113 = scmp.eq.s32.totalorder %s23, 1
      %p114 = por %p112, %p113
      %p116 = scmp.ne.s32.totalorder %s99, %s115
      %p117 = scmp.eq.s32.totalorder %s23, 0
      %p118 = por %p116, %p117
      %p119 = scmp.le.s32.totalorder 1, %s17
      %p120 = scmp.lt.s32.totalorder %s17, 3
      %p121 = pnand %p119, %p120
      %p122 = pneg %p121
      // Predicated region
      $region9: #{tpu_custom_call.1} parent=5 // pred_check
        _
      $region10: #{tpu_custom_call.1} parent=5 // pred_check_branch
        %124 = sbr.rel (%p121) target = $region12
      $region11: #{tpu_custom_call.1} parent=5 // pred_region
        %s125 = ssub.s32 %s17, 1
      $region12: #{tpu_custom_call.1} parent=5 // pred_fallthru
        _
      %p126 = scmp.lt.s32.totalorder %s17, 2
      // Predicated region
      $region13: #{tpu_custom_call.1} parent=5 // pred_check
        %p127 = pneg %p126
      $region14: #{tpu_custom_call.1} parent=5 // pred_check_branch
        %129 = sbr.rel (%p127) target = $region16
      $region15: #{tpu_custom_call.1} parent=5 // pred_region
        // Predicated region
        $region17: #{tpu_custom_call.1} parent=15 // pred_check
          %p130 = pneg %p51
        $region18: #{tpu_custom_call.1} parent=15 // pred_check_branch
          %132 = sbr.rel (%p130) target = $region20
        $region19: #{tpu_custom_call.1} parent=15 // pred_region
          %s133 = sand.u32 %s41, 1
          %s134 = scalar_lea.sflag [#allocation4], %s133
          %s135 = sand.u32 %s41, 1
          %s136 = smul.addr %s135, 8
          %s137 = scalar_lea.vmem [#allocation3], %s136
          %s138 = sadd.s32 %s24, %s25
          %s139 = smul.u32 8, %s138
          %s141 = ssub.s32 128, 128
          %142 = vsyncadd %s134, %s141
          %s143 = smul.addr %s139, 16
          %s144 = scalar_lea.hbm %s0, %s143
          %s146 = sshll.u32 %s137, 4
          %s147 = int_to_ptr.vmem [resolvable:$true] %s146
          %149 = dma.hbm_to_vmem [thread:$0]  %s144, 128, %s147, %s134
        $region20: #{tpu_custom_call.1} parent=15 // pred_fallthru
          _
        // Predicated region
        $region21: #{tpu_custom_call.1} parent=15 // pred_check
          %p150 = pneg %p79
        $region22: #{tpu_custom_call.1} parent=15 // pred_check_branch
          %152 = sbr.rel (%p150) target = $region24
        $region23: #{tpu_custom_call.1} parent=15 // pred_region
          %s153 = sand.u32 %s69, 1
          %s154 = scalar_lea.sflag [#allocation7], %s153
          %s155 = sand.u32 %s69, 1
          %s156 = smul.addr %s155, 1024
          %s157 = scalar_lea.vmem [#allocation6], %s156
          %s158 = sadd.s32 %s24, %s25
          %s159 = smul.u32 128, %s158
          %s161 = ssub.s32 16384, 16384
          %162 = vsyncadd %s154, %s161
          %s163 = smul.addr %s159, 2
          %s164 = smul.addr %s163, 64
          %s165 = scalar_lea.hbm %s1, %s164
          %s166 = sshll.u32 %s157, 4
          %s167 = int_to_ptr.vmem [resolvable:$true] %s166
          %172 = dma.hbm_to_vmem [thread:$0]  %s165, 16384, %s167, %s154, 128, 128, 8
        $region24: #{tpu_custom_call.1} parent=15 // pred_fallthru
          _
      $region16: #{tpu_custom_call.1} parent=5 // pred_fallthru
        _
      %p173 = scmp.le.s32.totalorder 1, %s17
      %p174 = scmp.lt.s32.totalorder %s17, 3
      %p175 = pnand %p173, %p174
      %p176 = pneg %p175
      // Predicated region
      $region25: #{tpu_custom_call.1} parent=5 // pred_check
        _
      $region26: #{tpu_custom_call.1} parent=5 // pred_check_branch
        %178 = sbr.rel (%p175) target = $region28
      $region27: #{tpu_custom_call.1} parent=5 // pred_region
        %s179 = ssub.s32 %s17, 1
        %s180 = sand.u32 %s44, 1
        %s181 = scalar_lea.sflag [#allocation4], %s180
        %s182 = sand.u32 %s44, 1
        %s183 = smul.addr %s182, 8
        %s184 = scalar_lea.vmem [#allocation3], %s183
        // Predicated region
        $region29: #{tpu_custom_call.1} parent=27 // pred_check
          %p185 = pneg %p57
        $region30: #{tpu_custom_call.1} parent=27 // pred_check_branch
          %187 = sbr.rel (%p185) target = $region32
        $region31: #{tpu_custom_call.1} parent=27 // pred_region
          %188 = dma.done %s181, 128
        $region32: #{tpu_custom_call.1} parent=27 // pred_fallthru
          _
        %s189 = sand.u32 %s72, 1
        %s190 = scalar_lea.sflag [#allocation7], %s189
        %s191 = sand.u32 %s72, 1
        %s192 = smul.addr %s191, 1024
        %s193 = scalar_lea.vmem [#allocation6], %s192
        // Predicated region
        $region33: #{tpu_custom_call.1} parent=27 // pred_check
          %p194 = pneg %p85
        $region34: #{tpu_custom_call.1} parent=27 // pred_check_branch
          %196 = sbr.rel (%p194) target = $region36
        $region35: #{tpu_custom_call.1} parent=27 // pred_region
          %197 = dma.done %s190, 16384
        $region36: #{tpu_custom_call.1} parent=27 // pred_fallthru
          _
        %s198 = sand.u32 %s44, 1
        %s199 = scalar_lea.sflag [#allocation4], %s198
        %s200 = sand.u32 %s44, 1
        %s201 = smul.addr %s200, 8
        %s202 = scalar_lea.vmem [#allocation3], %s201
        %p203 = pneg %p57
        %p204 = pneg %p54
        %s205 = sand.u32 %s72, 1
        %s206 = scalar_lea.sflag [#allocation7], %s205
        %s207 = sand.u32 %s72, 1
        %s208 = smul.addr %s207, 1024
        %s209 = scalar_lea.vmem [#allocation6], %s208
        %p210 = pneg %p85
        %p211 = pneg %p82
        %p212 = pneg %p111
        %p213 = pneg %p108
        %s214 = sand.u32 %s98, 1
        %s215 = scalar_lea.sflag [#allocation5], %s214
        %s216 = sand.u32 %s98, 1
        %s217 = smul.addr %s216, 2
        %s218 = scalar_lea.vmem [#allocation8], %s217
        %s219 = sadd.s32 %s26, %s27
        %s220 = smul.u32 8, %s219
        %s221 = sadd.s32 %s26, %s27
        %s222 = smul.u32 128, %s221
        %p223 = scmp.eq.s32.totalorder %s27, 0
        // Predicated region
        $region37: #{tpu_custom_call.1} parent=27 // pred_check
          %p224 = pneg %p223
        $region38: #{tpu_custom_call.1} parent=27 // pred_check_branch
          %226 = sbr.rel (%p224) target = $region40
        $region39: #{tpu_custom_call.1} parent=27 // pred_region
          %v227 = vlaneseq
          %vm228 = vcmp.ge.s32.totalorder %v227, 0
          %vm229 = vcmp.lt.s32.totalorder %v227, 256
          %vm230 = vmand %vm228, %vm229
          %231 = vst.msk [vmem:[#allocation2] sm:$0x3] %vm230, 0.0
        $region40: #{tpu_custom_call.1} parent=27 // pred_fallthru
          _
        %v232 = vld [vmem:[#allocation2] sm:$0x3]
        %v233 = vld [vmem:[%s184] sm:$0xff]
        %v234 = vld [vmem:[%s193] sm:$0xff]
        %v235 = vld [vmem:[%s193 + $0x8] sm:$0xff]
        %v236 = vld [vmem:[%s193 + $0x10] sm:$0xff]
        %v237 = vld [vmem:[%s193 + $0x18] sm:$0xff]
        %v238 = vld [vmem:[%s193 + $0x20] sm:$0xff]
        %v239 = vld [vmem:[%s193 + $0x28] sm:$0xff]
        %v240 = vld [vmem:[%s193 + $0x30] sm:$0xff]
        %v241 = vld [vmem:[%s193 + $0x38] sm:$0xff]
        %v242 = vld [vmem:[%s193 + $0x40] sm:$0xff]
        %v243 = vld [vmem:[%s193 + $0x48] sm:$0xff]
        %v244 = vld [vmem:[%s193 + $0x50] sm:$0xff]
        %v245 = vld [vmem:[%s193 + $0x58] sm:$0xff]
        %v246 = vld [vmem:[%s193 + $0x60] sm:$0xff]
        %v247 = vld [vmem:[%s193 + $0x68] sm:$0xff]
        %v248 = vld [vmem:[%s193 + $0x70] sm:$0xff]
        %v249 = vld [vmem:[%s193 + $0x78] sm:$0xff]
        %v250 = vld [vmem:[%s193 + $0x80] sm:$0xff]
        %v251 = vld [vmem:[%s193 + $0x88] sm:$0xff]
        %v252 = vld [vmem:[%s193 + $0x90] sm:$0xff]
        %v253 = vld [vmem:[%s193 + $0x98] sm:$0xff]
        %v254 = vld [vmem:[%s193 + $0xa0] sm:$0xff]
        %v255 = vld [vmem:[%s193 + $0xa8] sm:$0xff]
        %v256 = vld [vmem:[%s193 + $0xb0] sm:$0xff]
        %v257 = vld [vmem:[%s193 + $0xb8] sm:$0xff]
        %v258 = vld [vmem:[%s193 + $0xc0] sm:$0xff]
        %v259 = vld [vmem:[%s193 + $0xc8] sm:$0xff]
        %v260 = vld [vmem:[%s193 + $0xd0] sm:$0xff]
        %v261 = vld [vmem:[%s193 + $0xd8] sm:$0xff]
        %v262 = vld [vmem:[%s193 + $0xe0] sm:$0xff]
        %v263 = vld [vmem:[%s193 + $0xe8] sm:$0xff]
        %v264 = vld [vmem:[%s193 + $0xf0] sm:$0xff]
        %v265 = vld [vmem:[%s193 + $0xf8] sm:$0xff]
        %v266 = vld [vmem:[%s193 + $0x100] sm:$0xff]
        %v267 = vld [vmem:[%s193 + $0x108] sm:$0xff]
        %v268 = vld [vmem:[%s193 + $0x110] sm:$0xff]
        %v269 = vld [vmem:[%s193 + $0x118] sm:$0xff]
        %v270 = vld [vmem:[%s193 + $0x120] sm:$0xff]
        %v271 = vld [vmem:[%s193 + $0x128] sm:$0xff]
        %v272 = vld [vmem:[%s193 + $0x130] sm:$0xff]
        %v273 = vld [vmem:[%s193 + $0x138] sm:$0xff]
        %v274 = vld [vmem:[%s193 + $0x140] sm:$0xff]
        %v275 = vld [vmem:[%s193 + $0x148] sm:$0xff]
        %v276 = vld [vmem:[%s193 + $0x150] sm:$0xff]
        %v277 = vld [vmem:[%s193 + $0x158] sm:$0xff]
        %v278 = vld [vmem:[%s193 + $0x160] sm:$0xff]
        %v279 = vld [vmem:[%s193 + $0x168] sm:$0xff]
        %v280 = vld [vmem:[%s193 + $0x170] sm:$0xff]
        %v281 = vld [vmem:[%s193 + $0x178] sm:$0xff]
        %v282 = vld [vmem:[%s193 + $0x180] sm:$0xff]
        %v283 = vld [vmem:[%s193 + $0x188] sm:$0xff]
        %v284 = vld [vmem:[%s193 + $0x190] sm:$0xff]
        %v285 = vld [vmem:[%s193 + $0x198] sm:$0xff]
        %v286 = vld [vmem:[%s193 + $0x1a0] sm:$0xff]
        %v287 = vld [vmem:[%s193 + $0x1a8] sm:$0xff]
        %v288 = vld [vmem:[%s193 + $0x1b0] sm:$0xff]
        %v289 = vld [vmem:[%s193 + $0x1b8] sm:$0xff]
        %v290 = vld [vmem:[%s193 + $0x1c0] sm:$0xff]
        %v291 = vld [vmem:[%s193 + $0x1c8] sm:$0xff]
        %v292 = vld [vmem:[%s193 + $0x1d0] sm:$0xff]
        %v293 = vld [vmem:[%s193 + $0x1d8] sm:$0xff]
        %v294 = vld [vmem:[%s193 + $0x1e0] sm:$0xff]
        %v295 = vld [vmem:[%s193 + $0x1e8] sm:$0xff]
        %v296 = vld [vmem:[%s193 + $0x1f0] sm:$0xff]
        %v297 = vld [vmem:[%s193 + $0x1f8] sm:$0xff]
        %v298 = vld [vmem:[%s193 + $0x200] sm:$0xff]
        %v299 = vld [vmem:[%s193 + $0x208] sm:$0xff]
        %v300 = vld [vmem:[%s193 + $0x210] sm:$0xff]
        %v301 = vld [vmem:[%s193 + $0x218] sm:$0xff]
        %v302 = vld [vmem:[%s193 + $0x220] sm:$0xff]
        %v303 = vld [vmem:[%s193 + $0x228] sm:$0xff]
        %v304 = vld [vmem:[%s193 + $0x230] sm:$0xff]
        %v305 = vld [vmem:[%s193 + $0x238] sm:$0xff]
        %v306 = vld [vmem:[%s193 + $0x240] sm:$0xff]
        %v307 = vld [vmem:[%s193 + $0x248] sm:$0xff]
        %v308 = vld [vmem:[%s193 + $0x250] sm:$0xff]
        %v309 = vld [vmem:[%s193 + $0x258] sm:$0xff]
        %v310 = vld [vmem:[%s193 + $0x260] sm:$0xff]
        %v311 = vld [vmem:[%s193 + $0x268] sm:$0xff]
        %v312 = vld [vmem:[%s193 + $0x270] sm:$0xff]
        %v313 = vld [vmem:[%s193 + $0x278] sm:$0xff]
        %v314 = vld [vmem:[%s193 + $0x280] sm:$0xff]
        %v315 = vld [vmem:[%s193 + $0x288] sm:$0xff]
        %v316 = vld [vmem:[%s193 + $0x290] sm:$0xff]
        %v317 = vld [vmem:[%s193 + $0x298] sm:$0xff]
        %v318 = vld [vmem:[%s193 + $0x2a0] sm:$0xff]
        %v319 = vld [vmem:[%s193 + $0x2a8] sm:$0xff]
        %v320 = vld [vmem:[%s193 + $0x2b0] sm:$0xff]
        %v321 = vld [vmem:[%s193 + $0x2b8] sm:$0xff]
        %v322 = vld [vmem:[%s193 + $0x2c0] sm:$0xff]
        %v323 = vld [vmem:[%s193 + $0x2c8] sm:$0xff]
        %v324 = vld [vmem:[%s193 + $0x2d0] sm:$0xff]
        %v325 = vld [vmem:[%s193 + $0x2d8] sm:$0xff]
        %v326 = vld [vmem:[%s193 + $0x2e0] sm:$0xff]
        %v327 = vld [vmem:[%s193 + $0x2e8] sm:$0xff]
        %v328 = vld [vmem:[%s193 + $0x2f0] sm:$0xff]
        %v329 = vld [vmem:[%s193 + $0x2f8] sm:$0xff]
        %v330 = vld [vmem:[%s193 + $0x300] sm:$0xff]
        %v331 = vld [vmem:[%s193 + $0x308] sm:$0xff]
        %v332 = vld [vmem:[%s193 + $0x310] sm:$0xff]
        %v333 = vld [vmem:[%s193 + $0x318] sm:$0xff]
        %v334 = vld [vmem:[%s193 + $0x320] sm:$0xff]
        %v335 = vld [vmem:[%s193 + $0x328] sm:$0xff]
        %v336 = vld [vmem:[%s193 + $0x330] sm:$0xff]
        %v337 = vld [vmem:[%s193 + $0x338] sm:$0xff]
        %v338 = vld [vmem:[%s193 + $0x340] sm:$0xff]
        %v339 = vld [vmem:[%s193 + $0x348] sm:$0xff]
        %v340 = vld [vmem:[%s193 + $0x350] sm:$0xff]
        %v341 = vld [vmem:[%s193 + $0x358] sm:$0xff]
        %v342 = vld [vmem:[%s193 + $0x360] sm:$0xff]
        %v343 = vld [vmem:[%s193 + $0x368] sm:$0xff]
        %v344 = vld [vmem:[%s193 + $0x370] sm:$0xff]
        %v345 = vld [vmem:[%s193 + $0x378] sm:$0xff]
        %v346 = vld [vmem:[%s193 + $0x380] sm:$0xff]
        %v347 = vld [vmem:[%s193 + $0x388] sm:$0xff]
        %v348 = vld [vmem:[%s193 + $0x390] sm:$0xff]
        %v349 = vld [vmem:[%s193 + $0x398] sm:$0xff]
        %v350 = vld [vmem:[%s193 + $0x3a0] sm:$0xff]
        %v351 = vld [vmem:[%s193 + $0x3a8] sm:$0xff]
        %v352 = vld [vmem:[%s193 + $0x3b0] sm:$0xff]
        %v353 = vld [vmem:[%s193 + $0x3b8] sm:$0xff]
        %v354 = vld [vmem:[%s193 + $0x3c0] sm:$0xff]
        %v355 = vld [vmem:[%s193 + $0x3c8] sm:$0xff]
        %v356 = vld [vmem:[%s193 + $0x3d0] sm:$0xff]
        %v357 = vld [vmem:[%s193 + $0x3d8] sm:$0xff]
        %v358 = vld [vmem:[%s193 + $0x3e0] sm:$0xff]
        %v359 = vld [vmem:[%s193 + $0x3e8] sm:$0xff]
        %v360 = vld [vmem:[%s193 + $0x3f0] sm:$0xff]
        %v361 = vld [vmem:[%s193 + $0x3f8] sm:$0xff]
        %v363 = vcombine.high %v233, %v233
        %v365 = vunpack.c.l.s4 1966171168
        %v366 = vunpack.c.0.s8 %v365
        %v367 = vlaneseq
        %v368 = vshrl.u32 %v367, 7
        %v369 = vsub.s32 %v366, %v368
        %v370 = vrot.slane %v233, %v369
        %v372 = vunpack.c.l.s4 1966171168
        %v373 = vunpack.c.0.s8 %v372
        %v374 = vlaneseq
        %v375 = vshrl.u32 %v374, 7
        %v376 = vsub.s32 %v373, %v375
        %v377 = vrot.slane %v363, %v376
        %v378 = vcombine.high %v370, %v370
        %v379 = vcombine.high %v377, %v377
        %v381 = vunpack.c.l.s4 1966171168
        %v382 = vunpack.c.0.s8 %v381
        %v383 = vlaneseq
        %v384 = vshrl.u32 %v383, 7
        %v385 = vsub.s32 %v382, %v384
        %v386 = vrot.slane %v370, %v385
        %v388 = vunpack.c.l.s4 1966171168
        %v389 = vunpack.c.0.s8 %v388
        %v390 = vlaneseq
        %v391 = vshrl.u32 %v390, 7
        %v392 = vsub.s32 %v389, %v391
        %v393 = vrot.slane %v377, %v392
        %v395 = vunpack.c.l.s4 1966171168
        %v396 = vunpack.c.0.s8 %v395
        %v397 = vlaneseq
        %v398 = vshrl.u32 %v397, 7
        %v399 = vsub.s32 %v396, %v398
        %v400 = vrot.slane %v378, %v399
        %v402 = vunpack.c.l.s4 1966171168
        %v403 = vunpack.c.0.s8 %v402
        %v404 = vlaneseq
        %v405 = vshrl.u32 %v404, 7
        %v406 = vsub.s32 %v403, %v405
        %v407 = vrot.slane %v379, %v406
        %v408 = vcombine.high %v386, %v386
        %v409 = vcombine.high %v393, %v393
        %v410 = vcombine.high %v400, %v400
        %v411 = vcombine.high %v407, %v407
        %v548 = vunpack.c.l.b16 %v234
        %v549 = vunpack.c.h.b16 %v234
        %v550 = vunpack.c.l.b16 %v235
        %v551 = vunpack.c.h.b16 %v235
        %v552 = vunpack.c.l.b16 %v236
        %v553 = vunpack.c.h.b16 %v236
        %v554 = vunpack.c.l.b16 %v237
        %v555 = vunpack.c.h.b16 %v237
        %v556 = vunpack.c.l.b16 %v238
        %v557 = vunpack.c.h.b16 %v238
        %v558 = vunpack.c.l.b16 %v239
        %v559 = vunpack.c.h.b16 %v239
        %v560 = vunpack.c.l.b16 %v240
        %v561 = vunpack.c.h.b16 %v240
        %v562 = vunpack.c.l.b16 %v241
        %v563 = vunpack.c.h.b16 %v241
        %v564 = vunpack.c.l.b16 %v242
        %v565 = vunpack.c.h.b16 %v242
        %v566 = vunpack.c.l.b16 %v243
        %v567 = vunpack.c.h.b16 %v243
        %v568 = vunpack.c.l.b16 %v244
        %v569 = vunpack.c.h.b16 %v244
        %v570 = vunpack.c.l.b16 %v245
        %v571 = vunpack.c.h.b16 %v245
        %v572 = vunpack.c.l.b16 %v246
        %v573 = vunpack.c.h.b16 %v246
        %v574 = vunpack.c.l.b16 %v247
        %v575 = vunpack.c.h.b16 %v247
        %v576 = vunpack.c.l.b16 %v248
        %v577 = vunpack.c.h.b16 %v248
        %v578 = vunpack.c.l.b16 %v249
        %v579 = vunpack.c.h.b16 %v249
        %v580 = vunpack.c.l.b16 %v250
        %v581 = vunpack.c.h.b16 %v250
        %v582 = vunpack.c.l.b16 %v251
        %v583 = vunpack.c.h.b16 %v251
        %v584 = vunpack.c.l.b16 %v252
        %v585 = vunpack.c.h.b16 %v252
        %v586 = vunpack.c.l.b16 %v253
        %v587 = vunpack.c.h.b16 %v253
        %v588 = vunpack.c.l.b16 %v254
        %v589 = vunpack.c.h.b16 %v254
        %v590 = vunpack.c.l.b16 %v255
        %v591 = vunpack.c.h.b16 %v255
        %v592 = vunpack.c.l.b16 %v256
        %v593 = vunpack.c.h.b16 %v256
        %v594 = vunpack.c.l.b16 %v257
        %v595 = vunpack.c.h.b16 %v257
        %v596 = vunpack.c.l.b16 %v258
        %v597 = vunpack.c.h.b16 %v258
        %v598 = vunpack.c.l.b16 %v259
        %v599 = vunpack.c.h.b16 %v259
        %v600 = vunpack.c.l.b16 %v260
        %v601 = vunpack.c.h.b16 %v260
        %v602 = vunpack.c.l.b16 %v261
        %v603 = vunpack.c.h.b16 %v261
        %v604 = vunpack.c.l.b16 %v262
        %v605 = vunpack.c.h.b16 %v262
        %v606 = vunpack.c.l.b16 %v263
        %v607 = vunpack.c.h.b16 %v263
        %v608 = vunpack.c.l.b16 %v264
        %v609 = vunpack.c.h.b16 %v264
        %v610 = vunpack.c.l.b16 %v265
        %v611 = vunpack.c.h.b16 %v265
        %v612 = vunpack.c.l.b16 %v266
        %v613 = vunpack.c.h.b16 %v266
        %v614 = vunpack.c.l.b16 %v267
        %v615 = vunpack.c.h.b16 %v267
        %v616 = vunpack.c.l.b16 %v268
        %v617 = vunpack.c.h.b16 %v268
        %v618 = vunpack.c.l.b16 %v269
        %v619 = vunpack.c.h.b16 %v269
        %v620 = vunpack.c.l.b16 %v270
        %v621 = vunpack.c.h.b16 %v270
        %v622 = vunpack.c.l.b16 %v271
        %v623 = vunpack.c.h.b16 %v271
        %v624 = vunpack.c.l.b16 %v272
        %v625 = vunpack.c.h.b16 %v272
        %v626 = vunpack.c.l.b16 %v273
        %v627 = vunpack.c.h.b16 %v273
        %v628 = vunpack.c.l.b16 %v274
        %v629 = vunpack.c.h.b16 %v274
        %v630 = vunpack.c.l.b16 %v275
        %v631 = vunpack.c.h.b16 %v275
        %v632 = vunpack.c.l.b16 %v276
        %v633 = vunpack.c.h.b16 %v276
        %v634 = vunpack.c.l.b16 %v277
        %v635 = vunpack.c.h.b16 %v277
        %v636 = vunpack.c.l.b16 %v278
        %v637 = vunpack.c.h.b16 %v278
        %v638 = vunpack.c.l.b16 %v279
        %v639 = vunpack.c.h.b16 %v279
        %v640 = vunpack.c.l.b16 %v280
        %v641 = vunpack.c.h.b16 %v280
        %v642 = vunpack.c.l.b16 %v281
        %v643 = vunpack.c.h.b16 %v281
        %v644 = vunpack.c.l.b16 %v282
        %v645 = vunpack.c.h.b16 %v282
        %v646 = vunpack.c.l.b16 %v283
        %v647 = vunpack.c.h.b16 %v283
        %v648 = vunpack.c.l.b16 %v284
        %v649 = vunpack.c.h.b16 %v284
        %v650 = vunpack.c.l.b16 %v285
        %v651 = vunpack.c.h.b16 %v285
        %v652 = vunpack.c.l.b16 %v286
        %v653 = vunpack.c.h.b16 %v286
        %v654 = vunpack.c.l.b16 %v287
        %v655 = vunpack.c.h.b16 %v287
        %v656 = vunpack.c.l.b16 %v288
        %v657 = vunpack.c.h.b16 %v288
        %v658 = vunpack.c.l.b16 %v289
        %v659 = vunpack.c.h.b16 %v289
        %v660 = vunpack.c.l.b16 %v290
        %v661 = vunpack.c.h.b16 %v290
        %v662 = vunpack.c.l.b16 %v291
        %v663 = vunpack.c.h.b16 %v291
        %v664 = vunpack.c.l.b16 %v292
        %v665 = vunpack.c.h.b16 %v292
        %v666 = vunpack.c.l.b16 %v293
        %v667 = vunpack.c.h.b16 %v293
        %v668 = vunpack.c.l.b16 %v294
        %v669 = vunpack.c.h.b16 %v294
        %v670 = vunpack.c.l.b16 %v295
        %v671 = vunpack.c.h.b16 %v295
        %v672 = vunpack.c.l.b16 %v296
        %v673 = vunpack.c.h.b16 %v296
        %v674 = vunpack.c.l.b16 %v297
        %v675 = vunpack.c.h.b16 %v297
        %v676 = vunpack.c.l.b16 %v298
        %v677 = vunpack.c.h.b16 %v298
        %v678 = vunpack.c.l.b16 %v299
        %v679 = vunpack.c.h.b16 %v299
        %v680 = vunpack.c.l.b16 %v300
        %v681 = vunpack.c.h.b16 %v300
        %v682 = vunpack.c.l.b16 %v301
        %v683 = vunpack.c.h.b16 %v301
        %v684 = vunpack.c.l.b16 %v302
        %v685 = vunpack.c.h.b16 %v302
        %v686 = vunpack.c.l.b16 %v303
        %v687 = vunpack.c.h.b16 %v303
        %v688 = vunpack.c.l.b16 %v304
        %v689 = vunpack.c.h.b16 %v304
        %v690 = vunpack.c.l.b16 %v305
        %v691 = vunpack.c.h.b16 %v305
        %v692 = vunpack.c.l.b16 %v306
        %v693 = vunpack.c.h.b16 %v306
        %v694 = vunpack.c.l.b16 %v307
        %v695 = vunpack.c.h.b16 %v307
        %v696 = vunpack.c.l.b16 %v308
        %v697 = vunpack.c.h.b16 %v308
        %v698 = vunpack.c.l.b16 %v309
        %v699 = vunpack.c.h.b16 %v309
        %v700 = vunpack.c.l.b16 %v310
        %v701 = vunpack.c.h.b16 %v310
        %v702 = vunpack.c.l.b16 %v311
        %v703 = vunpack.c.h.b16 %v311
        %v704 = vunpack.c.l.b16 %v312
        %v705 = vunpack.c.h.b16 %v312
        %v706 = vunpack.c.l.b16 %v313
        %v707 = vunpack.c.h.b16 %v313
        %v708 = vunpack.c.l.b16 %v314
        %v709 = vunpack.c.h.b16 %v314
        %v710 = vunpack.c.l.b16 %v315
        %v711 = vunpack.c.h.b16 %v315
        %v712 = vunpack.c.l.b16 %v316
        %v713 = vunpack.c.h.b16 %v316
        %v714 = vunpack.c.l.b16 %v317
        %v715 = vunpack.c.h.b16 %v317
        %v716 = vunpack.c.l.b16 %v318
        %v717 = vunpack.c.h.b16 %v318
        %v718 = vunpack.c.l.b16 %v319
        %v719 = vunpack.c.h.b16 %v319
        %v720 = vunpack.c.l.b16 %v320
        %v721 = vunpack.c.h.b16 %v320
        %v722 = vunpack.c.l.b16 %v321
        %v723 = vunpack.c.h.b16 %v321
        %v724 = vunpack.c.l.b16 %v322
        %v725 = vunpack.c.h.b16 %v322
        %v726 = vunpack.c.l.b16 %v323
        %v727 = vunpack.c.h.b16 %v323
        %v728 = vunpack.c.l.b16 %v324
        %v729 = vunpack.c.h.b16 %v324
        %v730 = vunpack.c.l.b16 %v325
        %v731 = vunpack.c.h.b16 %v325
        %v732 = vunpack.c.l.b16 %v326
        %v733 = vunpack.c.h.b16 %v326
        %v734 = vunpack.c.l.b16 %v327
        %v735 = vunpack.c.h.b16 %v327
        %v736 = vunpack.c.l.b16 %v328
        %v737 = vunpack.c.h.b16 %v328
        %v738 = vunpack.c.l.b16 %v329
        %v739 = vunpack.c.h.b16 %v329
        %v740 = vunpack.c.l.b16 %v330
        %v741 = vunpack.c.h.b16 %v330
        %v742 = vunpack.c.l.b16 %v331
        %v743 = vunpack.c.h.b16 %v331
        %v744 = vunpack.c.l.b16 %v332
        %v745 = vunpack.c.h.b16 %v332
        %v746 = vunpack.c.l.b16 %v333
        %v747 = vunpack.c.h.b16 %v333
        %v748 = vunpack.c.l.b16 %v334
        %v749 = vunpack.c.h.b16 %v334
        %v750 = vunpack.c.l.b16 %v335
        %v751 = vunpack.c.h.b16 %v335
        %v752 = vunpack.c.l.b16 %v336
        %v753 = vunpack.c.h.b16 %v336
        %v754 = vunpack.c.l.b16 %v337
        %v755 = vunpack.c.h.b16 %v337
        %v756 = vunpack.c.l.b16 %v338
        %v757 = vunpack.c.h.b16 %v338
        %v758 = vunpack.c.l.b16 %v339
        %v759 = vunpack.c.h.b16 %v339
        %v760 = vunpack.c.l.b16 %v340
        %v761 = vunpack.c.h.b16 %v340
        %v762 = vunpack.c.l.b16 %v341
        %v763 = vunpack.c.h.b16 %v341
        %v764 = vunpack.c.l.b16 %v342
        %v765 = vunpack.c.h.b16 %v342
        %v766 = vunpack.c.l.b16 %v343
        %v767 = vunpack.c.h.b16 %v343
        %v768 = vunpack.c.l.b16 %v344
        %v769 = vunpack.c.h.b16 %v344
        %v770 = vunpack.c.l.b16 %v345
        %v771 = vunpack.c.h.b16 %v345
        %v772 = vunpack.c.l.b16 %v346
        %v773 = vunpack.c.h.b16 %v346
        %v774 = vunpack.c.l.b16 %v347
        %v775 = vunpack.c.h.b16 %v347
        %v776 = vunpack.c.l.b16 %v348
        %v777 = vunpack.c.h.b16 %v348
        %v778 = vunpack.c.l.b16 %v349
        %v779 = vunpack.c.h.b16 %v349
        %v780 = vunpack.c.l.b16 %v350
        %v781 = vunpack.c.h.b16 %v350
        %v782 = vunpack.c.l.b16 %v351
        %v783 = vunpack.c.h.b16 %v351
        %v784 = vunpack.c.l.b16 %v352
        %v785 = vunpack.c.h.b16 %v352
        %v786 = vunpack.c.l.b16 %v353
        %v787 = vunpack.c.h.b16 %v353
        %v788 = vunpack.c.l.b16 %v354
        %v789 = vunpack.c.h.b16 %v354
        %v790 = vunpack.c.l.b16 %v355
        %v791 = vunpack.c.h.b16 %v355
        %v792 = vunpack.c.l.b16 %v356
        %v793 = vunpack.c.h.b16 %v356
        %v794 = vunpack.c.l.b16 %v357
        %v795 = vunpack.c.h.b16 %v357
        %v796 = vunpack.c.l.b16 %v358
        %v797 = vunpack.c.h.b16 %v358
        %v798 = vunpack.c.l.b16 %v359
        %v799 = vunpack.c.h.b16 %v359
        %v800 = vunpack.c.l.b16 %v360
        %v801 = vunpack.c.h.b16 %v360
        %v802 = vunpack.c.l.b16 %v361
        %v803 = vunpack.c.h.b16 %v361
        %v804 = vpack.c.b16 %v550, %v548
        %v805 = vpack.c.b16 %v551, %v549
        %v806 = vpack.c.b16 %v554, %v552
        %v807 = vpack.c.b16 %v555, %v553
        %v808 = vpack.c.b16 %v558, %v556
        %v809 = vpack.c.b16 %v559, %v557
        %v810 = vpack.c.b16 %v562, %v560
        %v811 = vpack.c.b16 %v563, %v561
        %v812 = vpack.c.b16 %v566, %v564
        %v813 = vpack.c.b16 %v567, %v565
        %v814 = vpack.c.b16 %v570, %v568
        %v815 = vpack.c.b16 %v571, %v569
        %v816 = vpack.c.b16 %v574, %v572
        %v817 = vpack.c.b16 %v575, %v573
        %v818 = vpack.c.b16 %v578, %v576
        %v819 = vpack.c.b16 %v579, %v577
        %v820 = vpack.c.b16 %v582, %v580
        %v821 = vpack.c.b16 %v583, %v581
        %v822 = vpack.c.b16 %v586, %v584
        %v823 = vpack.c.b16 %v587, %v585
        %v824 = vpack.c.b16 %v590, %v588
        %v825 = vpack.c.b16 %v591, %v589
        %v826 = vpack.c.b16 %v594, %v592
        %v827 = vpack.c.b16 %v595, %v593
        %v828 = vpack.c.b16 %v598, %v596
        %v829 = vpack.c.b16 %v599, %v597
        %v830 = vpack.c.b16 %v602, %v600
        %v831 = vpack.c.b16 %v603, %v601
        %v832 = vpack.c.b16 %v606, %v604
        %v833 = vpack.c.b16 %v607, %v605
        %v834 = vpack.c.b16 %v610, %v608
        %v835 = vpack.c.b16 %v611, %v609
        %v836 = vpack.c.b16 %v614, %v612
        %v837 = vpack.c.b16 %v615, %v613
        %v838 = vpack.c.b16 %v618, %v616
        %v839 = vpack.c.b16 %v619, %v617
        %v840 = vpack.c.b16 %v622, %v620
        %v841 = vpack.c.b16 %v623, %v621
        %v842 = vpack.c.b16 %v626, %v624
        %v843 = vpack.c.b16 %v627, %v625
        %v844 = vpack.c.b16 %v630, %v628
        %v845 = vpack.c.b16 %v631, %v629
        %v846 = vpack.c.b16 %v634, %v632
        %v847 = vpack.c.b16 %v635, %v633
        %v848 = vpack.c.b16 %v638, %v636
        %v849 = vpack.c.b16 %v639, %v637
        %v850 = vpack.c.b16 %v642, %v640
        %v851 = vpack.c.b16 %v643, %v641
        %v852 = vpack.c.b16 %v646, %v644
        %v853 = vpack.c.b16 %v647, %v645
        %v854 = vpack.c.b16 %v650, %v648
        %v855 = vpack.c.b16 %v651, %v649
        %v856 = vpack.c.b16 %v654, %v652
        %v857 = vpack.c.b16 %v655, %v653
        %v858 = vpack.c.b16 %v658, %v656
        %v859 = vpack.c.b16 %v659, %v657
        %v860 = vpack.c.b16 %v662, %v660
        %v861 = vpack.c.b16 %v663, %v661
        %v862 = vpack.c.b16 %v666, %v664
        %v863 = vpack.c.b16 %v667, %v665
        %v864 = vpack.c.b16 %v670, %v668
        %v865 = vpack.c.b16 %v671, %v669
        %v866 = vpack.c.b16 %v674, %v672
        %v867 = vpack.c.b16 %v675, %v673
        %v868 = vpack.c.b16 %v678, %v676
        %v869 = vpack.c.b16 %v679, %v677
        %v870 = vpack.c.b16 %v682, %v680
        %v871 = vpack.c.b16 %v683, %v681
        %v872 = vpack.c.b16 %v686, %v684
        %v873 = vpack.c.b16 %v687, %v685
        %v874 = vpack.c.b16 %v690, %v688
        %v875 = vpack.c.b16 %v691, %v689
        %v876 = vpack.c.b16 %v694, %v692
        %v877 = vpack.c.b16 %v695, %v693
        %v878 = vpack.c.b16 %v698, %v696
        %v879 = vpack.c.b16 %v699, %v697
        %v880 = vpack.c.b16 %v702, %v700
        %v881 = vpack.c.b16 %v703, %v701
        %v882 = vpack.c.b16 %v706, %v704
        %v883 = vpack.c.b16 %v707, %v705
        %v884 = vpack.c.b16 %v710, %v708
        %v885 = vpack.c.b16 %v711, %v709
        %v886 = vpack.c.b16 %v714, %v712
        %v887 = vpack.c.b16 %v715, %v713
        %v888 = vpack.c.b16 %v718, %v716
        %v889 = vpack.c.b16 %v719, %v717
        %v890 = vpack.c.b16 %v722, %v720
        %v891 = vpack.c.b16 %v723, %v721
        %v892 = vpack.c.b16 %v726, %v724
        %v893 = vpack.c.b16 %v727, %v725
        %v894 = vpack.c.b16 %v730, %v728
        %v895 = vpack.c.b16 %v731, %v729
        %v896 = vpack.c.b16 %v734, %v732
        %v897 = vpack.c.b16 %v735, %v733
        %v898 = vpack.c.b16 %v738, %v736
        %v899 = vpack.c.b16 %v739, %v737
        %v900 = vpack.c.b16 %v742, %v740
        %v901 = vpack.c.b16 %v743, %v741
        %v902 = vpack.c.b16 %v746, %v744
        %v903 = vpack.c.b16 %v747, %v745
        %v904 = vpack.c.b16 %v750, %v748
        %v905 = vpack.c.b16 %v751, %v749
        %v906 = vpack.c.b16 %v754, %v752
        %v907 = vpack.c.b16 %v755, %v753
        %v908 = vpack.c.b16 %v758, %v756
        %v909 = vpack.c.b16 %v759, %v757
        %v910 = vpack.c.b16 %v762, %v760
        %v911 = vpack.c.b16 %v763, %v761
        %v912 = vpack.c.b16 %v766, %v764
        %v913 = vpack.c.b16 %v767, %v765
        %v914 = vpack.c.b16 %v770, %v768
        %v915 = vpack.c.b16 %v771, %v769
        %v916 = vpack.c.b16 %v774, %v772
        %v917 = vpack.c.b16 %v775, %v773
        %v918 = vpack.c.b16 %v778, %v776
        %v919 = vpack.c.b16 %v779, %v777
        %v920 = vpack.c.b16 %v782, %v780
        %v921 = vpack.c.b16 %v783, %v781
        %v922 = vpack.c.b16 %v786, %v784
        %v923 = vpack.c.b16 %v787, %v785
        %v924 = vpack.c.b16 %v790, %v788
        %v925 = vpack.c.b16 %v791, %v789
        %v926 = vpack.c.b16 %v794, %v792
        %v927 = vpack.c.b16 %v795, %v793
        %v928 = vpack.c.b16 %v798, %v796
        %v929 = vpack.c.b16 %v799, %v797
        %v930 = vpack.c.b16 %v802, %v800
        %v931 = vpack.c.b16 %v803, %v801
        %1060 = vmatprep.subr.bf16.mxu0 %v805
        %1061 = vmatpush1.bf16.msra.mxu0 %v804
        %1062 = vmatprep.subr.bf16.mxu0 %v807
        %1063 = vmatpush1.bf16.msra.mxu0 %v806
        %1064 = vmatprep.subr.bf16.mxu0 %v809
        %1065 = vmatpush1.bf16.msra.mxu0 %v808
        %1066 = vmatprep.subr.bf16.mxu0 %v811
        %1067 = vmatpush1.bf16.msra.mxu0 %v810
        %1068 = vmatprep.subr.bf16.mxu0 %v813
        %1069 = vmatpush1.bf16.msra.mxu0 %v812
        %1070 = vmatprep.subr.bf16.mxu0 %v815
        %1071 = vmatpush1.bf16.msra.mxu0 %v814
        %1072 = vmatprep.subr.bf16.mxu0 %v817
        %1073 = vmatpush1.bf16.msra.mxu0 %v816
        %1074 = vmatprep.subr.bf16.mxu0 %v819
        %1075 = vmatpush1.bf16.msra.mxu0 %v818
        %1076 = vmatprep.subr.bf16.mxu0 %v821
        %1077 = vmatpush1.bf16.msra.mxu0 %v820
        %1078 = vmatprep.subr.bf16.mxu0 %v823
        %1079 = vmatpush1.bf16.msra.mxu0 %v822
        %1080 = vmatprep.subr.bf16.mxu0 %v825
        %1081 = vmatpush1.bf16.msra.mxu0 %v824
        %1082 = vmatprep.subr.bf16.mxu0 %v827
        %1083 = vmatpush1.bf16.msra.mxu0 %v826
        %1084 = vmatprep.subr.bf16.mxu0 %v829
        %1085 = vmatpush1.bf16.msra.mxu0 %v828
        %1086 = vmatprep.subr.bf16.mxu0 %v831
        %1087 = vmatpush1.bf16.msra.mxu0 %v830
        %1088 = vmatprep.subr.bf16.mxu0 %v833
        %1089 = vmatpush1.bf16.msra.mxu0 %v832
        %1090 = vmatprep.subr.bf16.mxu0 %v835
        %1091 = vmatpush1.bf16.msra.mxu0 %v834
        %1092 = vmatprep.mubr.bf16.mxu0 %v400
        %1093 = vmatmul.mubr.bf16.gmra.mrb[0].mxu0 %v386
        %v1094 = vpop.f32.mrb[0].mxu0
        %v1095 = vadd.f32 0.0, %v1094
        %v1096 = vpop.f32.mrb[0].mxu0
        %v1097 = vadd.f32 0.0, %v1096
        %v1098 = vpop.f32.mrb[0].mxu0
        %v1099 = vpop.f32.mrb[0].mxu0
        %1100 = vdwg.mxu0
        %1101 = vmatprep.subr.bf16.mxu0 %v837
        %1102 = vmatpush1.bf16.msra.mxu0 %v836
        %1103 = vmatprep.subr.bf16.mxu0 %v839
        %1104 = vmatpush1.bf16.msra.mxu0 %v838
        %1105 = vmatprep.subr.bf16.mxu0 %v841
        %1106 = vmatpush1.bf16.msra.mxu0 %v840
        %1107 = vmatprep.subr.bf16.mxu0 %v843
        %1108 = vmatpush1.bf16.msra.mxu0 %v842
        %1109 = vmatprep.subr.bf16.mxu0 %v845
        %1110 = vmatpush1.bf16.msra.mxu0 %v844
        %1111 = vmatprep.subr.bf16.mxu0 %v847
        %1112 = vmatpush1.bf16.msra.mxu0 %v846
        %1113 = vmatprep.subr.bf16.mxu0 %v849
        %1114 = vmatpush1.bf16.msra.mxu0 %v848
        %1115 = vmatprep.subr.bf16.mxu0 %v851
        %1116 = vmatpush1.bf16.msra.mxu0 %v850
        %1117 = vmatprep.subr.bf16.mxu0 %v853
        %1118 = vmatpush1.bf16.msra.mxu0 %v852
        %1119 = vmatprep.subr.bf16.mxu0 %v855
        %1120 = vmatpush1.bf16.msra.mxu0 %v854
        %1121 = vmatprep.subr.bf16.mxu0 %v857
        %1122 = vmatpush1.bf16.msra.mxu0 %v856
        %1123 = vmatprep.subr.bf16.mxu0 %v859
        %1124 = vmatpush1.bf16.msra.mxu0 %v858
        %1125 = vmatprep.subr.bf16.mxu0 %v861
        %1126 = vmatpush1.bf16.msra.mxu0 %v860
        %1127 = vmatprep.subr.bf16.mxu0 %v863
        %1128 = vmatpush1.bf16.msra.mxu0 %v862
        %1129 = vmatprep.subr.bf16.mxu0 %v865
        %1130 = vmatpush1.bf16.msra.mxu0 %v864
        %1131 = vmatprep.subr.bf16.mxu0 %v867
        %1132 = vmatpush1.bf16.msra.mxu0 %v866
        %1133 = vmatprep.mubr.bf16.mxu0 %v410
        %1134 = vmatmul.mubr.bf16.gmra.mrb[0].mxu0 %v408
        %v1135 = vpop.f32.mrb[0].mxu0
        %v1136 = vadd.f32 %v1095, %v1135
        %v1137 = vpop.f32.mrb[0].mxu0
        %v1138 = vadd.f32 %v1097, %v1137
        %v1139 = vpop.f32.mrb[0].mxu0
        %v1140 = vpop.f32.mrb[0].mxu0
        %1141 = vdwg.mxu0
        %1142 = vmatprep.subr.bf16.mxu0 %v869
        %1143 = vmatpush1.bf16.msra.mxu0 %v868
        %1144 = vmatprep.subr.bf16.mxu0 %v871
        %1145 = vmatpush1.bf16.msra.mxu0 %v870
        %1146 = vmatprep.subr.bf16.mxu0 %v873
        %1147 = vmatpush1.bf16.msra.mxu0 %v872
        %1148 = vmatprep.subr.bf16.mxu0 %v875
        %1149 = vmatpush1.bf16.msra.mxu0 %v874
        %1150 = vmatprep.subr.bf16.mxu0 %v877
        %1151 = vmatpush1.bf16.msra.mxu0 %v876
        %1152 = vmatprep.subr.bf16.mxu0 %v879
        %1153 = vmatpush1.bf16.msra.mxu0 %v878
        %1154 = vmatprep.subr.bf16.mxu0 %v881
        %1155 = vmatpush1.bf16.msra.mxu0 %v880
        %1156 = vmatprep.subr.bf16.mxu0 %v883
        %1157 = vmatpush1.bf16.msra.mxu0 %v882
        %1158 = vmatprep.subr.bf16.mxu0 %v885
        %1159 = vmatpush1.bf16.msra.mxu0 %v884
        %1160 = vmatprep.subr.bf16.mxu0 %v887
        %1161 = vmatpush1.bf16.msra.mxu0 %v886
        %1162 = vmatprep.subr.bf16.mxu0 %v889
        %1163 = vmatpush1.bf16.msra.mxu0 %v888
        %1164 = vmatprep.subr.bf16.mxu0 %v891
        %1165 = vmatpush1.bf16.msra.mxu0 %v890
        %1166 = vmatprep.subr.bf16.mxu0 %v893
        %1167 = vmatpush1.bf16.msra.mxu0 %v892
        %1168 = vmatprep.subr.bf16.mxu0 %v895
        %1169 = vmatpush1.bf16.msra.mxu0 %v894
        %1170 = vmatprep.subr.bf16.mxu0 %v897
        %1171 = vmatpush1.bf16.msra.mxu0 %v896
        %1172 = vmatprep.subr.bf16.mxu0 %v899
        %1173 = vmatpush1.bf16.msra.mxu0 %v898
        %1174 = vmatprep.mubr.bf16.mxu0 %v407
        %1175 = vmatmul.mubr.bf16.gmra.mrb[0].mxu0 %v393
        %v1176 = vpop.f32.mrb[0].mxu0
        %v1177 = vadd.f32 %v1136, %v1176
        %v1178 = vpop.f32.mrb[0].mxu0
        %v1179 = vadd.f32 %v1138, %v1178
        %v1180 = vpop.f32.mrb[0].mxu0
        %v1181 = vpop.f32.mrb[0].mxu0
        %1182 = vdwg.mxu0
        %1183 = vmatprep.subr.bf16.mxu0 %v901
        %1184 = vmatpush1.bf16.msra.mxu0 %v900
        %1185 = vmatprep.subr.bf16.mxu0 %v903
        %1186 = vmatpush1.bf16.msra.mxu0 %v902
        %1187 = vmatprep.subr.bf16.mxu0 %v905
        %1188 = vmatpush1.bf16.msra.mxu0 %v904
        %1189 = vmatprep.subr.bf16.mxu0 %v907
        %1190 = vmatpush1.bf16.msra.mxu0 %v906
        %1191 = vmatprep.subr.bf16.mxu0 %v909
        %1192 = vmatpush1.bf16.msra.mxu0 %v908
        %1193 = vmatprep.subr.bf16.mxu0 %v911
        %1194 = vmatpush1.bf16.msra.mxu0 %v910
        %1195 = vmatprep.subr.bf16.mxu0 %v913
        %1196 = vmatpush1.bf16.msra.mxu0 %v912
        %1197 = vmatprep.subr.bf16.mxu0 %v915
        %1198 = vmatpush1.bf16.msra.mxu0 %v914
        %1199 = vmatprep.subr.bf16.mxu0 %v917
        %1200 = vmatpush1.bf16.msra.mxu0 %v916
        %1201 = vmatprep.subr.bf16.mxu0 %v919
        %1202 = vmatpush1.bf16.msra.mxu0 %v918
        %1203 = vmatprep.subr.bf16.mxu0 %v921
        %1204 = vmatpush1.bf16.msra.mxu0 %v920
        %1205 = vmatprep.subr.bf16.mxu0 %v923
        %1206 = vmatpush1.bf16.msra.mxu0 %v922
        %1207 = vmatprep.subr.bf16.mxu0 %v925
        %1208 = vmatpush1.bf16.msra.mxu0 %v924
        %1209 = vmatprep.subr.bf16.mxu0 %v927
        %1210 = vmatpush1.bf16.msra.mxu0 %v926
        %1211 = vmatprep.subr.bf16.mxu0 %v929
        %1212 = vmatpush1.bf16.msra.mxu0 %v928
        %1213 = vmatprep.subr.bf16.mxu0 %v931
        %1214 = vmatpush1.bf16.msra.mxu0 %v930
        %1215 = vmatprep.mubr.bf16.mxu0 %v411
        %1216 = vmatmul.mubr.bf16.gmra.mrb[0].mxu0 %v409
        %v1217 = vpop.f32.mrb[0].mxu0
        %v1218 = vadd.f32 %v1177, %v1217
        %v1219 = vpop.f32.mrb[0].mxu0
        %v1220 = vadd.f32 %v1179, %v1219
        %v1221 = vpop.f32.mrb[0].mxu0
        %v1222 = vpop.f32.mrb[0].mxu0
        %1223 = vdwg.mxu0
        %v1226 = vcombine.low %v1218, %v1220
        %v1228 = vunpack.c.l.s4 1966171168
        %v1229 = vunpack.c.0.s8 %v1228
        %v1230 = vlaneseq
        %v1231 = vshrl.u32 %v1230, 7
        %v1232 = vsub.s32 %v1229, %v1231
        %v1233 = vrot.slane %v1226, %v1232
        %v1235 = vunpack.c.l.s4 1966171168
        %v1236 = vunpack.c.0.s8 %v1235
        %v1237 = vlaneseq
        %v1238 = vshrl.u32 %v1237, 7
        %v1239 = vsub.s32 %v1236, %v1238
        %v1240 = vrot.slane %v1233, %v1239
        %v1242 = vadd.f32 %v232, %v1240
        %v1243 = vlaneseq
        %vm1244 = vcmp.ge.s32.totalorder %v1243, 0
        %vm1245 = vcmp.lt.s32.totalorder %v1243, 256
        %vm1246 = vmand %vm1244, %vm1245
        %1247 = vst.msk [vmem:[#allocation2] sm:$0x3] %vm1246, %v1242
        // Predicated region
        $region41: #{tpu_custom_call.1} parent=27 // pred_check
          %p1248 = pneg %p223
        $region42: #{tpu_custom_call.1} parent=27 // pred_check_branch
          %1250 = sbr.rel (%p1248) target = $region44
        $region43: #{tpu_custom_call.1} parent=27 // pred_region
          %v1251 = vld [vmem:[#allocation2] sm:$0x3]
          %1252 = vst.msk [vmem:[%s218] sm:$0x3] %vm1246, %v1251
        $region44: #{tpu_custom_call.1} parent=27 // pred_fallthru
          _
        %s1253 = sand.u32 %s98, 1
        %s1254 = scalar_lea.sflag [#allocation5], %s1253
        %s1255 = sand.u32 %s98, 1
        %s1256 = smul.addr %s1255, 2
        %s1257 = scalar_lea.vmem [#allocation8], %s1256
        // Predicated region
        $region45: #{tpu_custom_call.1} parent=27 // pred_check
          %p1258 = pneg %p108
        $region46: #{tpu_custom_call.1} parent=27 // pred_check_branch
          %1260 = sbr.rel (%p1258) target = $region48
        $region47: #{tpu_custom_call.1} parent=27 // pred_region
          %s1262 = ssub.s32 32, 32
          %1263 = vsyncadd %s1254, %s1262
          %s1264 = smul.addr %s26, 2
          %s1265 = smul.addr %s1264, 16
          %s1266 = scalar_lea.hbm %s2, %s1265
          %s1268 = sshll.u32 %s1257, 4
          %s1269 = int_to_ptr.vmem [resolvable:$true] %s1268
          %1271 = dma.vmem_to_hbm [thread:$0]  %s1269, 32, %s1266, %s1254
        $region48: #{tpu_custom_call.1} parent=27 // pred_fallthru
          _
      $region28: #{tpu_custom_call.1} parent=5 // pred_fallthru
        _
      %p1272 = scmp.le.s32.totalorder 2, %s17
      // Predicated region
      $region49: #{tpu_custom_call.1} parent=5 // pred_check
        %p1273 = pneg %p1272
      $region50: #{tpu_custom_call.1} parent=5 // pred_check_branch
        %1275 = sbr.rel (%p1273) target = $region52
      $region51: #{tpu_custom_call.1} parent=5 // pred_region
        %s1276 = ssub.s32 %s17, 2
        // Predicated region
        $region53: #{tpu_custom_call.1} parent=51 // pred_check
          %p1277 = pneg %p114
        $region54: #{tpu_custom_call.1} parent=51 // pred_check_branch
          %1279 = sbr.rel (%p1277) target = $region56
        $region55: #{tpu_custom_call.1} parent=51 // pred_region
          %s1280 = sand.u32 %s99, 1
          %s1281 = scalar_lea.sflag [#allocation5], %s1280
          %s1282 = sand.u32 %s99, 1
          %s1283 = smul.addr %s1282, 2
          %s1284 = scalar_lea.vmem [#allocation8], %s1283
          %1285 = dma.done %s1281, 32
        $region56: #{tpu_custom_call.1} parent=51 // pred_fallthru
          _
      $region52: #{tpu_custom_call.1} parent=5 // pred_fallthru
        _
    $region6: #{tpu_custom_call.1} parent=1 // loop_footer
      %s21 = sadd.s32 1, %s17
    $region7: #{tpu_custom_call.1} parent=1 // loop_footer_branch
      %16 = sbr.rel target = $region3
    $region8: #{tpu_custom_call.1} parent=1 // loop_exit
      _
    %1286 = vsyncpa [#allocation4], 1
    %s1287 = scalar_lea.sflag [#allocation4], 1
    %1288 = vsyncpa %s1287, 1
    %1289 = vsyncpa [#allocation7], 1
    %s1290 = scalar_lea.sflag [#allocation7], 1
    %1291 = vsyncpa %s1290, 1
    %1292 = vsyncpa [#allocation5], 1
    %s1293 = scalar_lea.sflag [#allocation5], 1
    %1294 = vsyncpa %s1293, 1

</llo_original>
